<compile_context>
chip_gen: v7x
topology: tpu7x:2x2x1
jax: 0.10.0
libtpu: 0.0.40
codegen_flags: <defaults>
</compile_context>

<pallas_src>
import functools

import jax
import jax.numpy as jnp
from jax import lax
from jax.experimental import pallas as pl
from jax.experimental.pallas import tpu as pltpu


def _log_sigmoid(x):
    # log(sigmoid(x)) = min(x, 0) - log(1 + exp(-|x|));  stable for any x.
    return jnp.minimum(x, 0.0) - jnp.log(1.0 + jnp.exp(-jnp.abs(x)))


def cbow_kernel(idx_ref, emb_ref, outw_ref, out_ref, *, context_size, num_neg):
    C, N = context_size, num_neg
    M = 1 + N                                # target + negatives per row

    idx = idx_ref[...]                       # (BB, C+M) int32
    emb = emb_ref[...]                       # (V, D) f32 -- embeddings.weight
    outw = outw_ref[...]                     # (V, D) f32 -- output_weights.weight

    BB = idx.shape[0]
    V, _ = emb.shape

    vocab_iota = lax.broadcasted_iota(jnp.int32, (BB, V), 1)

    # ---- context average: mean_c embeddings[context[:, c]] via ONE MXU matmul ----
    counts = jnp.zeros((BB, V), jnp.float32)
    for c in range(C):                       # static, small unroll (2-D ops only)
        counts = counts + (vocab_iota == idx[:, c:c + 1]).astype(jnp.float32)
    avg = jnp.dot(counts, emb, preferred_element_type=jnp.float32)
    avg = avg * (1.0 / C)                    # (BB, D): cheapest spot for the 1/C scale

    # ---- target (j == 0) and negatives (j > 0): one-hot gather from outw on the
    # MXU, then a D-lane reduce against the broadcast context average. ----
    pos_sum = jnp.float32(0.0)
    neg_sum = jnp.float32(0.0)
    for j in range(M):                       # static, small unroll (2-D ops only)
        onehot = (vocab_iota == idx[:, C + j:C + j + 1]).astype(jnp.float32)
        w = jnp.dot(onehot, outw, preferred_element_type=jnp.float32)   # (BB, D)
        s = jnp.sum(w * avg, axis=-1, keepdims=True)                    # (BB, 1)
        if j == 0:
            pos_sum = jnp.sum(_log_sigmoid(s))
        else:
            neg_sum = neg_sum + jnp.sum(_log_sigmoid(-s))

    # lane-dense (8, 128) partial-sum tile: [0,0] = pos_sum, [0,1] = neg_sum.
    r = lax.broadcasted_iota(jnp.int32, (8, 128), 0)
    c = lax.broadcasted_iota(jnp.int32, (8, 128), 1)
    tile = jnp.where((r == 0) & (c == 0), pos_sum,
                     jnp.where((r == 0) & (c == 1), neg_sum, 0.0))
    out_ref[...] = tile


def cbow_forward(context, target, neg_samples, emb_weight, outw_weight,
                 *, block_rows=8):
    """context: (B, C) int32, target: (B,) int32, neg_samples: (B, N) int32."""
    B, C = context.shape
    N = neg_samples.shape[1]
    V, D = emb_weight.shape
    assert B % block_rows == 0, "batch must be a multiple of block_rows"
    G = B // block_rows

    idx_all = jnp.concatenate(
        [context.astype(jnp.int32),
         target.reshape(-1, 1).astype(jnp.int32),
         neg_samples.astype(jnp.int32)], axis=1)                    # (B, C+1+N)

    kern = functools.partial(cbow_kernel, context_size=C, num_neg=N)

    # TODO(synk): at realistic word2vec sizes (V >= 64K, D >= 128) the
    # whole-table-in-VMEM design exceeds v7x's 64 MiB VMEM; add a V-blocked
    # "arbitrary" grid axis with an accumulator, or keep tables in pl.ANY/HBM
    # and DMA-gather only the needed rows (PrefetchScalarGridSpec + pl.Element).
    partials = pl.pallas_call(
        kern,
        out_shape=jax.ShapeDtypeStruct((G * 8, 128), jnp.float32),
        grid_spec=pltpu.PrefetchScalarGridSpec(
            num_scalar_prefetch=0,
            grid=(G,),
            in_specs=[
                pl.BlockSpec((block_rows, C + 1 + N), lambda i: (i, 0)),
                pl.BlockSpec((V, D), lambda i: (0, 0)),
                pl.BlockSpec((V, D), lambda i: (0, 0)),
            ],
            out_specs=pl.BlockSpec((8, 128), lambda i: (i, 0)),
        ),
        compiler_params=pltpu.CompilerParams(
            dimension_semantics=("parallel",)),
    )(idx_all, emb_weight, outw_weight)

    parts = partials.reshape(G, 8, 128)
    pos_total = jnp.sum(parts[:, 0, 0])
    neg_total = jnp.sum(parts[:, 0, 1])
    pos_loss = -pos_total / B
    neg_loss = -neg_total / (B * N)
    return pos_loss + neg_loss


def reference_forward(context, target, neg_samples, emb_weight, outw_weight):
    """Pure-JAX mirror of the PyTorch CBOW.forward for a correctness check."""
    ctx_e = emb_weight[context]                       # (B, C, D)
    avg = jnp.mean(ctx_e, axis=1)                     # (B, D)
    tgt_e = outw_weight[target]                       # (B, D)
    pos = jnp.sum(avg * tgt_e, axis=1)                # (B,)
    pos_loss = -jnp.mean(jnp.log(jax.nn.sigmoid(pos)))
    neg_e = outw_weight[neg_samples]                  # (B, N, D)
    neg = jnp.einsum('bnd,bd->bn', neg_e, avg)        # (B, N)
    neg_loss = -jnp.mean(jnp.log(jax.nn.sigmoid(-neg)))
    return pos_loss + neg_loss


if __name__ == "__main__":
    vocab_size, embed_dim = 32, 16
    context_size, num_neg_samples = 4, 5
    batch = 16                                        # multiple of block_rows=8

    key = jax.random.PRNGKey(0)
    k_emb, k_out, k_ctx, k_tgt, k_neg = jax.random.split(key, 5)

    # nn.Embedding default init: N(0, 1)
    emb_weight = jax.random.normal(k_emb, (vocab_size, embed_dim), jnp.float32)
    outw_weight = jax.random.normal(k_out, (vocab_size, embed_dim), jnp.float32)

    context = jax.random.randint(k_ctx, (batch, context_size), 0, vocab_size, jnp.int32)
    target = jax.random.randint(k_tgt, (batch,), 0, vocab_size, jnp.int32)
    neg_samples = jax.random.randint(k_neg, (batch, num_neg_samples), 0, vocab_size, jnp.int32)

    loss = cbow_forward(context, target, neg_samples, emb_weight, outw_weight)
    jax.block_until_ready(loss)

    ref = reference_forward(context, target, neg_samples, emb_weight, outw_weight)
    assert jnp.allclose(loss, ref, rtol=1e-5, atol=1e-5), (loss, ref)

    print("KERNEL_OK")
</pallas_src>

<mosaic_0001>
module attributes {stable_mosaic.version = 11 : i64} {
  func.func @cbow_kernel(%arg0: i32, %arg1: memref<8x10xi32, #tpu.memory_space<vmem>>, %arg2: memref<32x16xf32, #tpu.memory_space<vmem>>, %arg3: memref<32x16xf32, #tpu.memory_space<vmem>>, %arg4: memref<8x128xf32, #tpu.memory_space<vmem>>) attributes {dimension_semantics = [#tpu.dimension_semantics<parallel>], iteration_bounds = array<i64: 2>, scalar_prefetch = 0 : i64, scratch_operands = 0 : i64, tpu.core_type = #tpu.core_type<tc>, window_params = [{transform_indices = @transform_0, window_bounds = array<i64: 8, 10>}, {pipeline_mode = #tpu.pipeline_mode<synchronous>, transform_indices = @transform_1, window_bounds = array<i64: 32, 16>}, {pipeline_mode = #tpu.pipeline_mode<synchronous>, transform_indices = @transform_2, window_bounds = array<i64: 32, 16>}, {transform_indices = @transform_3, window_bounds = array<i64: 8, 128>}]} {
    %c0 = arith.constant 0 : index
    %c0_0 = arith.constant 0 : index
    %0 = vector.load %arg1[%c0, %c0_0] : memref<8x10xi32, #tpu.memory_space<vmem>>, vector<8x10xi32>
    %c0_1 = arith.constant 0 : index
    %c0_2 = arith.constant 0 : index
    %1 = vector.load %arg2[%c0_1, %c0_2] : memref<32x16xf32, #tpu.memory_space<vmem>>, vector<32x16xf32>
    %c0_3 = arith.constant 0 : index
    %c0_4 = arith.constant 0 : index
    %2 = vector.load %arg3[%c0_3, %c0_4] : memref<32x16xf32, #tpu.memory_space<vmem>>, vector<32x16xf32>
    %3 = tpu.iota {dimensions = array<i32: 1>} : vector<8x32xi32>
    %cst = arith.constant 0.000000e+00 : f32
    %4 = vector.broadcast %cst : f32 to vector<8x32xf32>
    %5 = vector.extract_strided_slice %0 {offsets = [0, 0], sizes = [8, 1], strides = [1, 1]} : vector<8x10xi32> to vector<8x1xi32>
    %6 = vector.broadcast %5 : vector<8x1xi32> to vector<8x32xi32>
    %7 = arith.cmpi eq, %3, %6 : vector<8x32xi32>
    %8 = arith.extui %7 : vector<8x32xi1> to vector<8x32xi32>
    %9 = arith.sitofp %8 : vector<8x32xi32> to vector<8x32xf32>
    %10 = arith.addf %4, %9 : vector<8x32xf32>
    %11 = vector.extract_strided_slice %0 {offsets = [0, 1], sizes = [8, 1], strides = [1, 1]} : vector<8x10xi32> to vector<8x1xi32>
    %12 = vector.broadcast %11 : vector<8x1xi32> to vector<8x32xi32>
    %13 = arith.cmpi eq, %3, %12 : vector<8x32xi32>
    %14 = arith.extui %13 : vector<8x32xi1> to vector<8x32xi32>
    %15 = arith.sitofp %14 : vector<8x32xi32> to vector<8x32xf32>
    %16 = arith.addf %10, %15 : vector<8x32xf32>
    %17 = vector.extract_strided_slice %0 {offsets = [0, 2], sizes = [8, 1], strides = [1, 1]} : vector<8x10xi32> to vector<8x1xi32>
    %18 = vector.broadcast %17 : vector<8x1xi32> to vector<8x32xi32>
    %19 = arith.cmpi eq, %3, %18 : vector<8x32xi32>
    %20 = arith.extui %19 : vector<8x32xi1> to vector<8x32xi32>
    %21 = arith.sitofp %20 : vector<8x32xi32> to vector<8x32xf32>
    %22 = arith.addf %16, %21 : vector<8x32xf32>
    %23 = vector.extract_strided_slice %0 {offsets = [0, 3], sizes = [8, 1], strides = [1, 1]} : vector<8x10xi32> to vector<8x1xi32>
    %24 = vector.broadcast %23 : vector<8x1xi32> to vector<8x32xi32>
    %25 = arith.cmpi eq, %3, %24 : vector<8x32xi32>
    %26 = arith.extui %25 : vector<8x32xi1> to vector<8x32xi32>
    %27 = arith.sitofp %26 : vector<8x32xi32> to vector<8x32xf32>
    %28 = arith.addf %22, %27 : vector<8x32xf32>
    %cst_5 = arith.constant dense<0.000000e+00> : vector<8x16xf32>
    %29 = tpu.matmul %28, %1, %cst_5 {dimension_numbers = #tpu.dot_dimension_numbers<[1], [0], [0], [1], [0, 0, 1, 1], [], []>} : vector<8x32xf32>, vector<32x16xf32>, vector<8x16xf32> -> vector<8x16xf32>
    %cst_6 = arith.constant 2.500000e-01 : f32
    %30 = vector.broadcast %cst_6 : f32 to vector<8x16xf32>
    %31 = arith.mulf %29, %30 : vector<8x16xf32>
    %32 = vector.extract_strided_slice %0 {offsets = [0, 4], sizes = [8, 1], strides = [1, 1]} : vector<8x10xi32> to vector<8x1xi32>
    %33 = vector.broadcast %32 : vector<8x1xi32> to vector<8x32xi32>
    %34 = arith.cmpi eq, %3, %33 : vector<8x32xi32>
    %35 = arith.extui %34 : vector<8x32xi1> to vector<8x32xi32>
    %36 = arith.sitofp %35 : vector<8x32xi32> to vector<8x32xf32>
    %cst_7 = arith.constant dense<0.000000e+00> : vector<8x16xf32>
    %37 = tpu.matmul %36, %2, %cst_7 {dimension_numbers = #tpu.dot_dimension_numbers<[1], [0], [0], [1], [0, 0, 1, 1], [], []>} : vector<8x32xf32>, vector<32x16xf32>, vector<8x16xf32> -> vector<8x16xf32>
    %38 = arith.mulf %37, %31 : vector<8x16xf32>
    %cst_8 = arith.constant dense<0.000000e+00> : vector<8xf32>
    %39 = vector.multi_reduction <add>, %38, %cst_8 [1] : vector<8x16xf32> to vector<8xf32>
    %40 = vector.shape_cast %39 : vector<8xf32> to vector<8x1xf32>
    %cst_9 = arith.constant 0.000000e+00 : f32
    %41 = vector.broadcast %cst_9 : f32 to vector<8x1xf32>
    %42 = arith.minimumf %40, %41 : vector<8x1xf32>
    %43 = math.absf %40 : vector<8x1xf32>
    %cst_10 = arith.constant 0.000000e+00 : f32
    %44 = vector.broadcast %cst_10 : f32 to vector<8x1xf32>
    %45 = arith.subf %44, %43 : vector<8x1xf32>
    %46 = math.exp %45 : vector<8x1xf32>
    %cst_11 = arith.constant 1.000000e+00 : f32
    %47 = vector.broadcast %cst_11 : f32 to vector<8x1xf32>
    %48 = arith.addf %47, %46 : vector<8x1xf32>
    %49 = math.log %48 : vector<8x1xf32>
    %50 = arith.subf %42, %49 : vector<8x1xf32>
    %51 = vector.shape_cast %50 : vector<8x1xf32> to vector<1x8x1xf32>
    %cst_12 = arith.constant dense<0.000000e+00> : vector<1xf32>
    %52 = vector.multi_reduction <add>, %51, %cst_12 [1, 2] : vector<1x8x1xf32> to vector<1xf32>
    %53 = vector.shape_cast %52 : vector<1xf32> to vector<1x1x1xf32>
    %54 = vector.extract %53[0, 0, 0] : f32 from vector<1x1x1xf32>
    %55 = vector.extract_strided_slice %0 {offsets = [0, 5], sizes = [8, 1], strides = [1, 1]} : vector<8x10xi32> to vector<8x1xi32>
    %56 = vector.broadcast %55 : vector<8x1xi32> to vector<8x32xi32>
    %57 = arith.cmpi eq, %3, %56 : vector<8x32xi32>
    %58 = arith.extui %57 : vector<8x32xi1> to vector<8x32xi32>
    %59 = arith.sitofp %58 : vector<8x32xi32> to vector<8x32xf32>
    %cst_13 = arith.constant dense<0.000000e+00> : vector<8x16xf32>
    %60 = tpu.matmul %59, %2, %cst_13 {dimension_numbers = #tpu.dot_dimension_numbers<[1], [0], [0], [1], [0, 0, 1, 1], [], []>} : vector<8x32xf32>, vector<32x16xf32>, vector<8x16xf32> -> vector<8x16xf32>
    %61 = arith.mulf %60, %31 : vector<8x16xf32>
    %cst_14 = arith.constant dense<0.000000e+00> : vector<8xf32>
    %62 = vector.multi_reduction <add>, %61, %cst_14 [1] : vector<8x16xf32> to vector<8xf32>
    %63 = vector.shape_cast %62 : vector<8xf32> to vector<8x1xf32>
    %cst_15 = arith.constant 0.000000e+00 : f32
    %64 = vector.broadcast %cst_15 : f32 to vector<8x1xf32>
    %65 = arith.subf %64, %63 : vector<8x1xf32>
    %cst_16 = arith.constant 0.000000e+00 : f32
    %66 = vector.broadcast %cst_16 : f32 to vector<8x1xf32>
    %67 = arith.minimumf %65, %66 : vector<8x1xf32>
    %68 = math.absf %65 : vector<8x1xf32>
    %cst_17 = arith.constant 0.000000e+00 : f32
    %69 = vector.broadcast %cst_17 : f32 to vector<8x1xf32>
    %70 = arith.subf %69, %68 : vector<8x1xf32>
    %71 = math.exp %70 : vector<8x1xf32>
    %cst_18 = arith.constant 1.000000e+00 : f32
    %72 = vector.broadcast %cst_18 : f32 to vector<8x1xf32>
    %73 = arith.addf %72, %71 : vector<8x1xf32>
    %74 = math.log %73 : vector<8x1xf32>
    %75 = arith.subf %67, %74 : vector<8x1xf32>
    %76 = vector.shape_cast %75 : vector<8x1xf32> to vector<1x8x1xf32>
    %cst_19 = arith.constant dense<0.000000e+00> : vector<1xf32>
    %77 = vector.multi_reduction <add>, %76, %cst_19 [1, 2] : vector<1x8x1xf32> to vector<1xf32>
    %78 = vector.shape_cast %77 : vector<1xf32> to vector<1x1x1xf32>
    %79 = vector.extract %78[0, 0, 0] : f32 from vector<1x1x1xf32>
    %cst_20 = arith.constant 0.000000e+00 : f32
    %80 = arith.addf %cst_20, %79 : f32
    %81 = vector.extract_strided_slice %0 {offsets = [0, 6], sizes = [8, 1], strides = [1, 1]} : vector<8x10xi32> to vector<8x1xi32>
    %82 = vector.broadcast %81 : vector<8x1xi32> to vector<8x32xi32>
    %83 = arith.cmpi eq, %3, %82 : vector<8x32xi32>
    %84 = arith.extui %83 : vector<8x32xi1> to vector<8x32xi32>
    %85 = arith.sitofp %84 : vector<8x32xi32> to vector<8x32xf32>
    %cst_21 = arith.constant dense<0.000000e+00> : vector<8x16xf32>
    %86 = tpu.matmul %85, %2, %cst_21 {dimension_numbers = #tpu.dot_dimension_numbers<[1], [0], [0], [1], [0, 0, 1, 1], [], []>} : vector<8x32xf32>, vector<32x16xf32>, vector<8x16xf32> -> vector<8x16xf32>
    %87 = arith.mulf %86, %31 : vector<8x16xf32>
    %cst_22 = arith.constant dense<0.000000e+00> : vector<8xf32>
    %88 = vector.multi_reduction <add>, %87, %cst_22 [1] : vector<8x16xf32> to vector<8xf32>
    %89 = vector.shape_cast %88 : vector<8xf32> to vector<8x1xf32>
    %cst_23 = arith.constant 0.000000e+00 : f32
    %90 = vector.broadcast %cst_23 : f32 to vector<8x1xf32>
    %91 = arith.subf %90, %89 : vector<8x1xf32>
    %cst_24 = arith.constant 0.000000e+00 : f32
    %92 = vector.broadcast %cst_24 : f32 to vector<8x1xf32>
    %93 = arith.minimumf %91, %92 : vector<8x1xf32>
    %94 = math.absf %91 : vector<8x1xf32>
    %cst_25 = arith.constant 0.000000e+00 : f32
    %95 = vector.broadcast %cst_25 : f32 to vector<8x1xf32>
    %96 = arith.subf %95, %94 : vector<8x1xf32>
    %97 = math.exp %96 : vector<8x1xf32>
    %cst_26 = arith.constant 1.000000e+00 : f32
    %98 = vector.broadcast %cst_26 : f32 to vector<8x1xf32>
    %99 = arith.addf %98, %97 : vector<8x1xf32>
    %100 = math.log %99 : vector<8x1xf32>
    %101 = arith.subf %93, %100 : vector<8x1xf32>
    %102 = vector.shape_cast %101 : vector<8x1xf32> to vector<1x8x1xf32>
    %cst_27 = arith.constant dense<0.000000e+00> : vector<1xf32>
    %103 = vector.multi_reduction <add>, %102, %cst_27 [1, 2] : vector<1x8x1xf32> to vector<1xf32>
    %104 = vector.shape_cast %103 : vector<1xf32> to vector<1x1x1xf32>
    %105 = vector.extract %104[0, 0, 0] : f32 from vector<1x1x1xf32>
    %106 = arith.addf %80, %105 : f32
    %107 = vector.extract_strided_slice %0 {offsets = [0, 7], sizes = [8, 1], strides = [1, 1]} : vector<8x10xi32> to vector<8x1xi32>
    %108 = vector.broadcast %107 : vector<8x1xi32> to vector<8x32xi32>
    %109 = arith.cmpi eq, %3, %108 : vector<8x32xi32>
    %110 = arith.extui %109 : vector<8x32xi1> to vector<8x32xi32>
    %111 = arith.sitofp %110 : vector<8x32xi32> to vector<8x32xf32>
    %cst_28 = arith.constant dense<0.000000e+00> : vector<8x16xf32>
    %112 = tpu.matmul %111, %2, %cst_28 {dimension_numbers = #tpu.dot_dimension_numbers<[1], [0], [0], [1], [0, 0, 1, 1], [], []>} : vector<8x32xf32>, vector<32x16xf32>, vector<8x16xf32> -> vector<8x16xf32>
    %113 = arith.mulf %112, %31 : vector<8x16xf32>
    %cst_29 = arith.constant dense<0.000000e+00> : vector<8xf32>
    %114 = vector.multi_reduction <add>, %113, %cst_29 [1] : vector<8x16xf32> to vector<8xf32>
    %115 = vector.shape_cast %114 : vector<8xf32> to vector<8x1xf32>
    %cst_30 = arith.constant 0.000000e+00 : f32
    %116 = vector.broadcast %cst_30 : f32 to vector<8x1xf32>
    %117 = arith.subf %116, %115 : vector<8x1xf32>
    %cst_31 = arith.constant 0.000000e+00 : f32
    %118 = vector.broadcast %cst_31 : f32 to vector<8x1xf32>
    %119 = arith.minimumf %117, %118 : vector<8x1xf32>
    %120 = math.absf %117 : vector<8x1xf32>
    %cst_32 = arith.constant 0.000000e+00 : f32
    %121 = vector.broadcast %cst_32 : f32 to vector<8x1xf32>
    %122 = arith.subf %121, %120 : vector<8x1xf32>
    %123 = math.exp %122 : vector<8x1xf32>
    %cst_33 = arith.constant 1.000000e+00 : f32
    %124 = vector.broadcast %cst_33 : f32 to vector<8x1xf32>
    %125 = arith.addf %124, %123 : vector<8x1xf32>
    %126 = math.log %125 : vector<8x1xf32>
    %127 = arith.subf %119, %126 : vector<8x1xf32>
    %128 = vector.shape_cast %127 : vector<8x1xf32> to vector<1x8x1xf32>
    %cst_34 = arith.constant dense<0.000000e+00> : vector<1xf32>
    %129 = vector.multi_reduction <add>, %128, %cst_34 [1, 2] : vector<1x8x1xf32> to vector<1xf32>
    %130 = vector.shape_cast %129 : vector<1xf32> to vector<1x1x1xf32>
    %131 = vector.extract %130[0, 0, 0] : f32 from vector<1x1x1xf32>
    %132 = arith.addf %106, %131 : f32
    %133 = vector.extract_strided_slice %0 {offsets = [0, 8], sizes = [8, 1], strides = [1, 1]} : vector<8x10xi32> to vector<8x1xi32>
    %134 = vector.broadcast %133 : vector<8x1xi32> to vector<8x32xi32>
    %135 = arith.cmpi eq, %3, %134 : vector<8x32xi32>
    %136 = arith.extui %135 : vector<8x32xi1> to vector<8x32xi32>
    %137 = arith.sitofp %136 : vector<8x32xi32> to vector<8x32xf32>
    %cst_35 = arith.constant dense<0.000000e+00> : vector<8x16xf32>
    %138 = tpu.matmul %137, %2, %cst_35 {dimension_numbers = #tpu.dot_dimension_numbers<[1], [0], [0], [1], [0, 0, 1, 1], [], []>} : vector<8x32xf32>, vector<32x16xf32>, vector<8x16xf32> -> vector<8x16xf32>
    %139 = arith.mulf %138, %31 : vector<8x16xf32>
    %cst_36 = arith.constant dense<0.000000e+00> : vector<8xf32>
    %140 = vector.multi_reduction <add>, %139, %cst_36 [1] : vector<8x16xf32> to vector<8xf32>
    %141 = vector.shape_cast %140 : vector<8xf32> to vector<8x1xf32>
    %cst_37 = arith.constant 0.000000e+00 : f32
    %142 = vector.broadcast %cst_37 : f32 to vector<8x1xf32>
    %143 = arith.subf %142, %141 : vector<8x1xf32>
    %cst_38 = arith.constant 0.000000e+00 : f32
    %144 = vector.broadcast %cst_38 : f32 to vector<8x1xf32>
    %145 = arith.minimumf %143, %144 : vector<8x1xf32>
    %146 = math.absf %143 : vector<8x1xf32>
    %cst_39 = arith.constant 0.000000e+00 : f32
    %147 = vector.broadcast %cst_39 : f32 to vector<8x1xf32>
    %148 = arith.subf %147, %146 : vector<8x1xf32>
    %149 = math.exp %148 : vector<8x1xf32>
    %cst_40 = arith.constant 1.000000e+00 : f32
    %150 = vector.broadcast %cst_40 : f32 to vector<8x1xf32>
    %151 = arith.addf %150, %149 : vector<8x1xf32>
    %152 = math.log %151 : vector<8x1xf32>
    %153 = arith.subf %145, %152 : vector<8x1xf32>
    %154 = vector.shape_cast %153 : vector<8x1xf32> to vector<1x8x1xf32>
    %cst_41 = arith.constant dense<0.000000e+00> : vector<1xf32>
    %155 = vector.multi_reduction <add>, %154, %cst_41 [1, 2] : vector<1x8x1xf32> to vector<1xf32>
    %156 = vector.shape_cast %155 : vector<1xf32> to vector<1x1x1xf32>
    %157 = vector.extract %156[0, 0, 0] : f32 from vector<1x1x1xf32>
    %158 = arith.addf %132, %157 : f32
    %159 = vector.extract_strided_slice %0 {offsets = [0, 9], sizes = [8, 1], strides = [1, 1]} : vector<8x10xi32> to vector<8x1xi32>
    %160 = vector.broadcast %159 : vector<8x1xi32> to vector<8x32xi32>
    %161 = arith.cmpi eq, %3, %160 : vector<8x32xi32>
    %162 = arith.extui %161 : vector<8x32xi1> to vector<8x32xi32>
    %163 = arith.sitofp %162 : vector<8x32xi32> to vector<8x32xf32>
    %cst_42 = arith.constant dense<0.000000e+00> : vector<8x16xf32>
    %164 = tpu.matmul %163, %2, %cst_42 {dimension_numbers = #tpu.dot_dimension_numbers<[1], [0], [0], [1], [0, 0, 1, 1], [], []>} : vector<8x32xf32>, vector<32x16xf32>, vector<8x16xf32> -> vector<8x16xf32>
    %165 = arith.mulf %164, %31 : vector<8x16xf32>
    %cst_43 = arith.constant dense<0.000000e+00> : vector<8xf32>
    %166 = vector.multi_reduction <add>, %165, %cst_43 [1] : vector<8x16xf32> to vector<8xf32>
    %167 = vector.shape_cast %166 : vector<8xf32> to vector<8x1xf32>
    %cst_44 = arith.constant 0.000000e+00 : f32
    %168 = vector.broadcast %cst_44 : f32 to vector<8x1xf32>
    %169 = arith.subf %168, %167 : vector<8x1xf32>
    %cst_45 = arith.constant 0.000000e+00 : f32
    %170 = vector.broadcast %cst_45 : f32 to vector<8x1xf32>
    %171 = arith.minimumf %169, %170 : vector<8x1xf32>
    %172 = math.absf %169 : vector<8x1xf32>
    %cst_46 = arith.constant 0.000000e+00 : f32
    %173 = vector.broadcast %cst_46 : f32 to vector<8x1xf32>
    %174 = arith.subf %173, %172 : vector<8x1xf32>
    %175 = math.exp %174 : vector<8x1xf32>
    %cst_47 = arith.constant 1.000000e+00 : f32
    %176 = vector.broadcast %cst_47 : f32 to vector<8x1xf32>
    %177 = arith.addf %176, %175 : vector<8x1xf32>
    %178 = math.log %177 : vector<8x1xf32>
    %179 = arith.subf %171, %178 : vector<8x1xf32>
    %180 = vector.shape_cast %179 : vector<8x1xf32> to vector<1x8x1xf32>
    %cst_48 = arith.constant dense<0.000000e+00> : vector<1xf32>
    %181 = vector.multi_reduction <add>, %180, %cst_48 [1, 2] : vector<1x8x1xf32> to vector<1xf32>
    %182 = vector.shape_cast %181 : vector<1xf32> to vector<1x1x1xf32>
    %183 = vector.extract %182[0, 0, 0] : f32 from vector<1x1x1xf32>
    %184 = arith.addf %158, %183 : f32
    %185 = tpu.iota {dimensions = array<i32: 0>} : vector<8x128xi32>
    %186 = tpu.iota {dimensions = array<i32: 1>} : vector<8x128xi32>
    %c0_i32 = arith.constant 0 : i32
    %187 = vector.broadcast %c0_i32 : i32 to vector<8x128xi32>
    %188 = arith.cmpi eq, %185, %187 : vector<8x128xi32>
    %c0_i32_49 = arith.constant 0 : i32
    %189 = vector.broadcast %c0_i32_49 : i32 to vector<8x128xi32>
    %190 = arith.cmpi eq, %186, %189 : vector<8x128xi32>
    %191 = arith.andi %188, %190 : vector<8x128xi1>
    %c0_i32_50 = arith.constant 0 : i32
    %192 = vector.broadcast %c0_i32_50 : i32 to vector<8x128xi32>
    %193 = arith.cmpi eq, %185, %192 : vector<8x128xi32>
    %c1_i32 = arith.constant 1 : i32
    %194 = vector.broadcast %c1_i32 : i32 to vector<8x128xi32>
    %195 = arith.cmpi eq, %186, %194 : vector<8x128xi32>
    %196 = arith.andi %193, %195 : vector<8x128xi1>
    %cst_51 = arith.constant 0.000000e+00 : f32
    %197 = vector.broadcast %184 : f32 to vector<8x128xf32>
    %198 = vector.broadcast %cst_51 : f32 to vector<8x128xf32>
    %199 = arith.select %196, %197, %198 : vector<8x128xi1>, vector<8x128xf32>
    %200 = vector.broadcast %54 : f32 to vector<8x128xf32>
    %201 = arith.select %191, %200, %199 : vector<8x128xi1>, vector<8x128xf32>
    %c0_52 = arith.constant 0 : index
    %c0_53 = arith.constant 0 : index
    %202 = vector.load %arg4[%c0_52, %c0_53] : memref<8x128xf32, #tpu.memory_space<vmem>>, vector<8x128xf32>
    tpu.vector_store %arg4[%c0_52, %c0_53], %201 {strides = array<i32>} : memref<8x128xf32, #tpu.memory_space<vmem>>, vector<8x128xf32>,
    return
  }
  func.func @transform_0(%arg0: i32) -> (i32, i32) {
    %c0_i32 = arith.constant 0 : i32
    %c0_i32_0 = arith.constant 0 : i32
    return %arg0, %c0_i32 : i32, i32
  }
  func.func @transform_1(%arg0: i32) -> (i32, i32) {
    %c0_i32 = arith.constant 0 : i32
    %c0_i32_0 = arith.constant 0 : i32
    %c0_i32_1 = arith.constant 0 : i32
    return %c0_i32, %c0_i32_0 : i32, i32
  }
  func.func @transform_2(%arg0: i32) -> (i32, i32) {
    %c0_i32 = arith.constant 0 : i32
    %c0_i32_0 = arith.constant 0 : i32
    %c0_i32_1 = arith.constant 0 : i32
    return %c0_i32, %c0_i32_0 : i32, i32
  }
  func.func @transform_3(%arg0: i32) -> (i32, i32) {
    %c0_i32 = arith.constant 0 : i32
    %c0_i32_0 = arith.constant 0 : i32
    return %arg0, %c0_i32 : i32, i32
  }
}

</mosaic_0001>

<llo_original>
// kernel: tpu_custom_call.1
$region0: #{tpu_custom_call.1}
  #allocation0 [shape = 'u32[]', space=smem, size = 0x4, offset = 0x4, fixed_abs, tag = 'smem constant byte address 0x4 - core index']
  #allocation1 [shape = 'u32[144,128]{1,0:T(1,128)}', space=vmem, size = 0x12000, scoped, tag = 'internal scratch']
  %s0 = inlined_call_operand.vmem [shape: s32[16,10], index: 0, kind: input, shape index: {}]
  %s1 = inlined_call_operand.vmem [shape: f32[32,16], index: 1, kind: input, shape index: {}]
  %s2 = inlined_call_operand.vmem [shape: f32[32,16], index: 2, kind: input, shape index: {}]
  %s3 = inlined_call_operand.hbm [shape: f32[16,128], index: 3, kind: output, shape index: {}]
  %s4 = sld [smem:[#allocation0]]
  $region45: #{tpu_custom_call.1} parent=0
    _
  %s6 = ssub.s32 1, %s4
  %s7 = scalar_select 0, %s6, %s4
  $region1: #{tpu_custom_call.1} parent=0
    #allocation2 [shape = 'u8[8192]{0}', space=vmem, size = 0x2000, scoped, tag = 'output window, operand 0']
    #allocation3 [shape = 's32[2]{0}', space=sflag, size = 0x8, scoped, tag = 'scoped memory for tpu_custom_call.1']
    %8 = vsyncpa [#allocation3], 0
    %s9 = scalar_lea.sflag [#allocation3], 1
    %10 = vsyncpa %s9, 0
    loop: start=0, step=1, limit=4
    $region2: #{tpu_custom_call.1} parent=1 // loop_pre_header
      _
    $region3: #{tpu_custom_call.1} parent=1 // loop_header
      %s12 = sphi 0, %s16
      %p13 = scmp.ge.s32.totalorder %s12, 4
      %s22 = sphi 0, %s24
      %s25 = sphi 0, %s22
      %s26 = sphi 0, %s25
      %s42 = sphi 0, %s26
      %s46 = sphi 0, %s46
      %s48 = sphi 0, %s46
      %s49 = sphi 0, %s48
      %s63 = sphi 0, %s49
      %s67 = sphi 0, %s67
      %s69 = sphi 0, %s67
      %s70 = sphi 0, %s69
      %s84 = sphi 0, %s70
      %s90 = sphi 0, %s92
      %s93 = sphi 0, %s90
      %s94 = sphi 0, %s93
      %s110 = sphi 0, %s94
    $region4: #{tpu_custom_call.1} parent=1 // loop_header_branch
      %15 = sbr.rel (%p13) target = $region8
    $region5: #{tpu_custom_call.1} parent=1 // loop_body
      %s17 = ssub.s32 %s12, 1
      %s18 = ssub.s32 %s12, 2
      %s19 = sadd.s32 %s12, 1
      %s20 = ssub.s32 %s12, %s19
      %p21 = scmp.eq.s32.totalorder %s20, 0
      %s23 = sadd.s32 %s22, 1
      %s24 = scalar_select %p21, %s22, %s23
      %p27 = pneg %p21
      %p28 = scmp.eq.s32.totalorder %s12, 1
      %p29 = por %p27, %p28
      %p30 = scmp.ne.s32.totalorder %s22, %s25
      %p31 = scmp.eq.s32.totalorder %s12, 0
      %p32 = por %p30, %p31
      %p33 = scmp.ne.s32.totalorder %s22, %s25
      %p34 = scmp.eq.s32.totalorder %s17, 1
      %p35 = por %p33, %p34
      %p36 = scmp.ne.s32.totalorder %s25, %s26
      %p37 = scmp.eq.s32.totalorder %s17, 0
      %p38 = por %p36, %p37
      %p39 = scmp.ne.s32.totalorder %s25, %s26
      %p40 = scmp.eq.s32.totalorder %s18, 1
      %p41 = por %p39, %p40
      %p43 = scmp.ne.s32.totalorder %s26, %s42
      %p44 = scmp.eq.s32.totalorder %s18, 0
      %p45 = por %p43, %p44
      %s47 = sadd.s32 %s46, 1
      %p50 = scmp.eq.s32.totalorder %s12, 1
      %p51 = scmp.ne.s32.totalorder %s46, %s48
      %p52 = scmp.eq.s32.totalorder %s12, 0
      %p53 = por %p51, %p52
      %p54 = scmp.ne.s32.totalorder %s46, %s48
      %p55 = scmp.eq.s32.totalorder %s17, 1
      %p56 = por %p54, %p55
      %p57 = scmp.ne.s32.totalorder %s48, %s49
      %p58 = scmp.eq.s32.totalorder %s17, 0
      %p59 = por %p57, %p58
      %p60 = scmp.ne.s32.totalorder %s48, %s49
      %p61 = scmp.eq.s32.totalorder %s18, 1
      %p62 = por %p60, %p61
      %p64 = scmp.ne.s32.totalorder %s49, %s63
      %p65 = scmp.eq.s32.totalorder %s18, 0
      %p66 = por %p64, %p65
      %s68 = sadd.s32 %s67, 1
      %p71 = scmp.eq.s32.totalorder %s12, 1
      %p72 = scmp.ne.s32.totalorder %s67, %s69
      %p73 = scmp.eq.s32.totalorder %s12, 0
      %p74 = por %p72, %p73
      %p75 = scmp.ne.s32.totalorder %s67, %s69
      %p76 = scmp.eq.s32.totalorder %s17, 1
      %p77 = por %p75, %p76
      %p78 = scmp.ne.s32.totalorder %s69, %s70
      %p79 = scmp.eq.s32.totalorder %s17, 0
      %p80 = por %p78, %p79
      %p81 = scmp.ne.s32.totalorder %s69, %s70
      %p82 = scmp.eq.s32.totalorder %s18, 1
      %p83 = por %p81, %p82
      %p85 = scmp.ne.s32.totalorder %s70, %s84
      %p86 = scmp.eq.s32.totalorder %s18, 0
      %p87 = por %p85, %p86
      %s88 = ssub.s32 %s12, %s19
      %p89 = scmp.eq.s32.totalorder %s88, 0
      %s91 = sadd.s32 %s90, 1
      %s92 = scalar_select %p89, %s90, %s91
      %p95 = pneg %p89
      %p96 = scmp.eq.s32.totalorder %s12, 1
      %p97 = por %p95, %p96
      %p98 = scmp.ne.s32.totalorder %s90, %s93
      %p99 = scmp.eq.s32.totalorder %s12, 0
      %p100 = por %p98, %p99
      %p101 = scmp.ne.s32.totalorder %s90, %s93
      %p102 = scmp.eq.s32.totalorder %s17, 1
      %p103 = por %p101, %p102
      %p104 = scmp.ne.s32.totalorder %s93, %s94
      %p105 = scmp.eq.s32.totalorder %s17, 0
      %p106 = por %p104, %p105
      %p107 = scmp.ne.s32.totalorder %s93, %s94
      %p108 = scmp.eq.s32.totalorder %s18, 1
      %p109 = por %p107, %p108
      %p111 = scmp.ne.s32.totalorder %s94, %s110
      %p112 = scmp.eq.s32.totalorder %s18, 0
      %p113 = por %p111, %p112
      %p114 = scmp.le.s32.totalorder 1, %s12
      %p115 = scmp.lt.s32.totalorder %s12, 3
      %p116 = pnand %p114, %p115
      %p117 = pneg %p116
      // Predicated region
      $region9: #{tpu_custom_call.1} parent=5 // pred_check
        _
      $region10: #{tpu_custom_call.1} parent=5 // pred_check_branch
        %119 = sbr.rel (%p116) target = $region12
      $region11: #{tpu_custom_call.1} parent=5 // pred_region
        %s120 = ssub.s32 %s12, 1
        // Predicated region
        $region13: #{tpu_custom_call.1} parent=11 // pred_check
          %p121 = pneg %p59
        $region14: #{tpu_custom_call.1} parent=11 // pred_check_branch
          %123 = sbr.rel (%p121) target = $region16
        $region15: #{tpu_custom_call.1} parent=11 // pred_region
          _
        $region16: #{tpu_custom_call.1} parent=11 // pred_fallthru
          _
        // Predicated region
        $region17: #{tpu_custom_call.1} parent=11 // pred_check
          %p124 = pneg %p80
        $region18: #{tpu_custom_call.1} parent=11 // pred_check_branch
          %126 = sbr.rel (%p124) target = $region20
        $region19: #{tpu_custom_call.1} parent=11 // pred_region
          _
        $region20: #{tpu_custom_call.1} parent=11 // pred_fallthru
          _
      $region12: #{tpu_custom_call.1} parent=5 // pred_fallthru
        _
      %p127 = scmp.lt.s32.totalorder %s12, 2
      // Predicated region
      $region21: #{tpu_custom_call.1} parent=5 // pred_check
        %p128 = pneg %p127
      $region22: #{tpu_custom_call.1} parent=5 // pred_check_branch
        %130 = sbr.rel (%p128) target = $region24
      $region23: #{tpu_custom_call.1} parent=5 // pred_region
        // Predicated region
        $region25: #{tpu_custom_call.1} parent=23 // pred_check
          %p131 = pneg %p32
        $region26: #{tpu_custom_call.1} parent=23 // pred_check_branch
          %133 = sbr.rel (%p131) target = $region28
        $region27: #{tpu_custom_call.1} parent=23 // pred_region
          %p134 = scmp.lt.s32.totalorder %s12, 1
          %s135 = scalar_select %p134, %s12, 1
          %s136 = smul.addr %s135, 8
          %s137 = scalar_lea.vmem %s0, %s136
        $region28: #{tpu_custom_call.1} parent=23 // pred_fallthru
          _
      $region24: #{tpu_custom_call.1} parent=5 // pred_fallthru
        _
      %p138 = scmp.le.s32.totalorder 1, %s12
      %p139 = scmp.lt.s32.totalorder %s12, 3
      %p140 = pnand %p138, %p139
      %p141 = pneg %p140
      // Predicated region
      $region29: #{tpu_custom_call.1} parent=5 // pred_check
        _
      $region30: #{tpu_custom_call.1} parent=5 // pred_check_branch
        %143 = sbr.rel (%p140) target = $region32
      $region31: #{tpu_custom_call.1} parent=5 // pred_region
        %s144 = ssub.s32 %s12, 1
        %p145 = scmp.lt.s32.totalorder %s17, 1
        %s146 = scalar_select %p145, %s17, 1
        %s147 = smul.addr %s146, 8
        %s148 = scalar_lea.vmem %s0, %s147
        %p149 = pneg %p38
        %p150 = pneg %p35
        %p151 = pneg %p59
        %p152 = pneg %p56
        %p153 = pneg %p80
        %p154 = pneg %p77
        %p155 = pneg %p106
        %p156 = pneg %p103
        %s157 = sand.u32 %s93, 1
        %s158 = scalar_lea.sflag [#allocation3], %s157
        %s159 = sand.u32 %s93, 1
        %s160 = smul.addr %s159, 8
        %s161 = scalar_lea.vmem [#allocation2], %s160
        %p162 = scmp.lt.s32.totalorder %s17, 1
        %s163 = scalar_select %p162, %s17, 1
        %s164 = smul.addr %s163, 8
        %s165 = scalar_lea.vmem %s0, %s164
        %v166 = vld [vmem:[%s165] sm:$0xff]
        %v167 = vld [vmem:[%s1] sm:$0xff]
        %v168 = vld [vmem:[%s1 + $0x8] sm:$0xff]
        %v169 = vld [vmem:[%s1 + $0x10] sm:$0xff]
        %v170 = vld [vmem:[%s1 + $0x18] sm:$0xff]
        %v171 = vld [vmem:[%s2] sm:$0xff]
        %v172 = vld [vmem:[%s2 + $0x8] sm:$0xff]
        %v173 = vld [vmem:[%s2 + $0x10] sm:$0xff]
        %v174 = vld [vmem:[%s2 + $0x18] sm:$0xff]
        %v175 = vlaneseq
        %v176 = vand.u32 %v175, 127
        %177 = vset.pattern.permute.xlu0 0
        %178 = vperm.xlu0 %177, %v166
        %v179 = vpop.permute.xlu0 %178
        %vm180 = vcmp.eq.s32.totalorder %v176, %v179
        %v181 = vsel %vm180, 1, 0
        %v182 = vcvt.s32.f32 %v181
        %v183 = vadd.f32 %v182, 0.0
        %184 = vset.pattern.permute.xlu0 1
        %185 = vperm.xlu0 %184, %v166
        %v186 = vpop.permute.xlu0 %185
        %vm187 = vcmp.eq.s32.totalorder %v176, %v186
        %v188 = vsel %vm187, 1, 0
        %v189 = vcvt.s32.f32 %v188
        %v190 = vadd.f32 %v183, %v189
        %191 = vset.pattern.permute.xlu0 2
        %192 = vperm.xlu0 %191, %v166
        %v193 = vpop.permute.xlu0 %192
        %vm194 = vcmp.eq.s32.totalorder %v176, %v193
        %v195 = vsel %vm194, 1, 0
        %v196 = vcvt.s32.f32 %v195
        %v197 = vadd.f32 %v190, %v196
        %198 = vset.pattern.permute.xlu0 3
        %199 = vperm.xlu0 %198, %v166
        %v200 = vpop.permute.xlu0 %199
        %vm201 = vcmp.eq.s32.totalorder %v176, %v200
        %v202 = vsel %vm201, 1, 0
        %v203 = vcvt.s32.f32 %v202
        %v204 = vadd.f32 %v197, %v203
        %vm205 = vcmask 261120
        %v207 = vsel %vm205, %v204, 0
        %209 = vmatprep.subr.mxu0 0.0
        %210 = vmatpush1.msra.mxu0 %v167
        %211 = vmatprep.subr.mxu0 0.0
        %212 = vmatpush1.msra.mxu0 %v168
        %213 = vmatprep.subr.mxu0 0.0
        %214 = vmatpush1.msra.mxu0 %v169
        %215 = vmatprep.subr.mxu0 0.0
        %216 = vmatpush1.msra.mxu0 %v170
        %217 = vmatprep.subr.mxu0 0.0
        %218 = vmatpush1.msra.mxu0 0.0
        %219 = vmatprep.subr.mxu0 0.0
        %220 = vmatpush1.msra.mxu0 0.0
        %221 = vmatprep.subr.mxu0 0.0
        %222 = vmatpush1.msra.mxu0 0.0
        %223 = vmatprep.subr.mxu0 0.0
        %224 = vmatpush1.msra.mxu0 0.0
        %225 = vmatprep.subr.mxu0 0.0
        %226 = vmatpush1.msra.mxu0 0.0
        %227 = vmatprep.subr.mxu0 0.0
        %228 = vmatpush1.msra.mxu0 0.0
        %229 = vmatprep.subr.mxu0 0.0
        %230 = vmatpush1.msra.mxu0 0.0
        %231 = vmatprep.subr.mxu0 0.0
        %232 = vmatpush1.msra.mxu0 0.0
        %233 = vmatprep.subr.mxu0 0.0
        %234 = vmatpush1.msra.mxu0 0.0
        %235 = vmatprep.subr.mxu0 0.0
        %236 = vmatpush1.msra.mxu0 0.0
        %237 = vmatprep.subr.mxu0 0.0
        %238 = vmatpush1.msra.mxu0 0.0
        %239 = vmatprep.subr.mxu0 0.0
        %240 = vmatpush1.msra.mxu0 0.0
        %241 = vmatprep.subr.mxu0 0.0
        %242 = vmatpush1.msra.mxu0 0.0
        %243 = vmatprep.subr.mxu0 0.0
        %244 = vmatpush1.msra.mxu0 0.0
        %245 = vmatprep.subr.mxu0 0.0
        %246 = vmatpush1.msra.mxu0 0.0
        %247 = vmatprep.subr.mxu0 0.0
        %248 = vmatpush1.msra.mxu0 0.0
        %249 = vmatprep.subr.mxu0 0.0
        %250 = vmatpush1.msra.mxu0 0.0
        %251 = vmatprep.subr.mxu0 0.0
        %252 = vmatpush1.msra.mxu0 0.0
        %253 = vmatprep.subr.mxu0 0.0
        %254 = vmatpush1.msra.mxu0 0.0
        %255 = vmatprep.subr.mxu0 0.0
        %256 = vmatpush1.msra.mxu0 0.0
        %257 = vmatprep.subr.mxu0 0.0
        %258 = vmatpush1.msra.mxu0 0.0
        %259 = vmatprep.subr.mxu0 0.0
        %260 = vmatpush1.msra.mxu0 0.0
        %261 = vmatprep.subr.mxu0 0.0
        %262 = vmatpush1.msra.mxu0 0.0
        %263 = vmatprep.subr.mxu0 0.0
        %264 = vmatpush1.msra.mxu0 0.0
        %265 = vmatprep.subr.mxu0 0.0
        %266 = vmatpush1.msra.mxu0 0.0
        %267 = vmatprep.subr.mxu0 0.0
        %268 = vmatpush1.msra.mxu0 0.0
        %269 = vmatprep.subr.mxu0 0.0
        %270 = vmatpush1.msra.mxu0 0.0
        %271 = vmatprep.subr.mxu0 0.0
        %272 = vmatpush1.msra.mxu0 0.0
        %273 = vmatprep.mubr.f32.mxu0 0.0
        %274 = vmatmul.mubr.f32.gmra.mrb[0].mxu0 %v207
        %v275 = vpop.f32.mrb[0].mxu0
        %v276 = vadd.f32 0.0, %v275
        %v277 = vpop.f32.mrb[0].mxu0
        %278 = vdwg.mxu0
        %v279 = vmul.f32 %v276, 0.25
        %280 = vset.pattern.permute.xlu0 4
        %281 = vperm.xlu0 %280, %v166
        %v282 = vpop.permute.xlu0 %281
        %vm283 = vcmp.eq.s32.totalorder %v176, %v282
        %v284 = vsel %vm283, 1, 0
        %v285 = vcvt.s32.f32 %v284
        %v287 = vsel %vm205, %v285, 0
        %289 = vmatprep.subr.mxu0 0.0
        %290 = vmatpush1.msra.mxu0 %v171
        %291 = vmatprep.subr.mxu0 0.0
        %292 = vmatpush1.msra.mxu0 %v172
        %293 = vmatprep.subr.mxu0 0.0
        %294 = vmatpush1.msra.mxu0 %v173
        %295 = vmatprep.subr.mxu0 0.0
        %296 = vmatpush1.msra.mxu0 %v174
        %297 = vmatprep.subr.mxu0 0.0
        %298 = vmatpush1.msra.mxu0 0.0
        %299 = vmatprep.subr.mxu0 0.0
        %300 = vmatpush1.msra.mxu0 0.0
        %301 = vmatprep.subr.mxu0 0.0
        %302 = vmatpush1.msra.mxu0 0.0
        %303 = vmatprep.subr.mxu0 0.0
        %304 = vmatpush1.msra.mxu0 0.0
        %305 = vmatprep.subr.mxu0 0.0
        %306 = vmatpush1.msra.mxu0 0.0
        %307 = vmatprep.subr.mxu0 0.0
        %308 = vmatpush1.msra.mxu0 0.0
        %309 = vmatprep.subr.mxu0 0.0
        %310 = vmatpush1.msra.mxu0 0.0
        %311 = vmatprep.subr.mxu0 0.0
        %312 = vmatpush1.msra.mxu0 0.0
        %313 = vmatprep.subr.mxu0 0.0
        %314 = vmatpush1.msra.mxu0 0.0
        %315 = vmatprep.subr.mxu0 0.0
        %316 = vmatpush1.msra.mxu0 0.0
        %317 = vmatprep.subr.mxu0 0.0
        %318 = vmatpush1.msra.mxu0 0.0
        %319 = vmatprep.subr.mxu0 0.0
        %320 = vmatpush1.msra.mxu0 0.0
        %321 = vmatprep.subr.mxu0 0.0
        %322 = vmatpush1.msra.mxu0 0.0
        %323 = vmatprep.subr.mxu0 0.0
        %324 = vmatpush1.msra.mxu0 0.0
        %325 = vmatprep.subr.mxu0 0.0
        %326 = vmatpush1.msra.mxu0 0.0
        %327 = vmatprep.subr.mxu0 0.0
        %328 = vmatpush1.msra.mxu0 0.0
        %329 = vmatprep.subr.mxu0 0.0
        %330 = vmatpush1.msra.mxu0 0.0
        %331 = vmatprep.subr.mxu0 0.0
        %332 = vmatpush1.msra.mxu0 0.0
        %333 = vmatprep.subr.mxu0 0.0
        %334 = vmatpush1.msra.mxu0 0.0
        %335 = vmatprep.subr.mxu0 0.0
        %336 = vmatpush1.msra.mxu0 0.0
        %337 = vmatprep.subr.mxu0 0.0
        %338 = vmatpush1.msra.mxu0 0.0
        %339 = vmatprep.subr.mxu0 0.0
        %340 = vmatpush1.msra.mxu0 0.0
        %341 = vmatprep.subr.mxu0 0.0
        %342 = vmatpush1.msra.mxu0 0.0
        %343 = vmatprep.subr.mxu0 0.0
        %344 = vmatpush1.msra.mxu0 0.0
        %345 = vmatprep.subr.mxu0 0.0
        %346 = vmatpush1.msra.mxu0 0.0
        %347 = vmatprep.subr.mxu0 0.0
        %348 = vmatpush1.msra.mxu0 0.0
        %349 = vmatprep.subr.mxu0 0.0
        %350 = vmatpush1.msra.mxu0 0.0
        %351 = vmatprep.subr.mxu0 0.0
        %352 = vmatpush1.msra.mxu0 0.0
        %353 = vmatprep.mubr.f32.mxu0 0.0
        %354 = vmatmul.mubr.f32.gmra.mrb[0].mxu0 %v287
        %v355 = vpop.f32.mrb[0].mxu0
        %v356 = vadd.f32 0.0, %v355
        %v357 = vpop.f32.mrb[0].mxu0
        %358 = vdwg.mxu0
        %v359 = vmul.f32 %v356, %v279
        %vm360 = vcmask 130048
        %v361 = vsel %vm360, %v359, 0.0
        %362 = vadd.xlane.f32.xlu0 %v361
        %v363 = vpop.xlane.xlu0 %362
        %v364 = vmin.f32 %v363, 0.0
        %v365 = vand.u32 2147483647, %v363
        %v366 = vsub.f32 0.0, %v365
        %v367 = vmul.f32 %v366, 1.442695
        %v368 = vpow.pop %v367
        %v369 = vadd.f32 %v368, 1.0
        %v370 = vlog2.pop %v369
        %v371 = vmul.f32 %v370, 0.6931472
        %v372 = vsub.f32 %v364, %v371
        %vm373 = vcmask 7168
        %v374 = vsel %vm373, %v372, 0.0
        %375 = vadd.xlane.f32.xlu0 %v374
        %v376 = vpop.xlane.xlu0 %375
        %v377 = vrot.slane %v376, 4
        %v378 = vadd.f32 %v376, %v377
        %v379 = vrot.slane %v378, 2
        %v380 = vadd.f32 %v378, %v379
        %v381 = vrot.slane %v380, 1
        %v382 = vadd.f32 %v380, %v381
        %s383 = vtos %v382
        %384 = vset.pattern.permute.xlu0 5
        %385 = vperm.xlu0 %384, %v166
        %v386 = vpop.permute.xlu0 %385
        %vm387 = vcmp.eq.s32.totalorder %v176, %v386
        %v388 = vsel %vm387, 1, 0
        %v389 = vcvt.s32.f32 %v388
        %v391 = vsel %vm205, %v389, 0
        %393 = vmatprep.subr.mxu0 0.0
        %394 = vmatpush1.msra.mxu0 %v171
        %395 = vmatprep.subr.mxu0 0.0
        %396 = vmatpush1.msra.mxu0 %v172
        %397 = vmatprep.subr.mxu0 0.0
        %398 = vmatpush1.msra.mxu0 %v173
        %399 = vmatprep.subr.mxu0 0.0
        %400 = vmatpush1.msra.mxu0 %v174
        %401 = vmatprep.subr.mxu0 0.0
        %402 = vmatpush1.msra.mxu0 0.0
        %403 = vmatprep.subr.mxu0 0.0
        %404 = vmatpush1.msra.mxu0 0.0
        %405 = vmatprep.subr.mxu0 0.0
        %406 = vmatpush1.msra.mxu0 0.0
        %407 = vmatprep.subr.mxu0 0.0
        %408 = vmatpush1.msra.mxu0 0.0
        %409 = vmatprep.subr.mxu0 0.0
        %410 = vmatpush1.msra.mxu0 0.0
        %411 = vmatprep.subr.mxu0 0.0
        %412 = vmatpush1.msra.mxu0 0.0
        %413 = vmatprep.subr.mxu0 0.0
        %414 = vmatpush1.msra.mxu0 0.0
        %415 = vmatprep.subr.mxu0 0.0
        %416 = vmatpush1.msra.mxu0 0.0
        %417 = vmatprep.subr.mxu0 0.0
        %418 = vmatpush1.msra.mxu0 0.0
        %419 = vmatprep.subr.mxu0 0.0
        %420 = vmatpush1.msra.mxu0 0.0
        %421 = vmatprep.subr.mxu0 0.0
        %422 = vmatpush1.msra.mxu0 0.0
        %423 = vmatprep.subr.mxu0 0.0
        %424 = vmatpush1.msra.mxu0 0.0
        %425 = vmatprep.subr.mxu0 0.0
        %426 = vmatpush1.msra.mxu0 0.0
        %427 = vmatprep.subr.mxu0 0.0
        %428 = vmatpush1.msra.mxu0 0.0
        %429 = vmatprep.subr.mxu0 0.0
        %430 = vmatpush1.msra.mxu0 0.0
        %431 = vmatprep.subr.mxu0 0.0
        %432 = vmatpush1.msra.mxu0 0.0
        %433 = vmatprep.subr.mxu0 0.0
        %434 = vmatpush1.msra.mxu0 0.0
        %435 = vmatprep.subr.mxu0 0.0
        %436 = vmatpush1.msra.mxu0 0.0
        %437 = vmatprep.subr.mxu0 0.0
        %438 = vmatpush1.msra.mxu0 0.0
        %439 = vmatprep.subr.mxu0 0.0
        %440 = vmatpush1.msra.mxu0 0.0
        %441 = vmatprep.subr.mxu0 0.0
        %442 = vmatpush1.msra.mxu0 0.0
        %443 = vmatprep.subr.mxu0 0.0
        %444 = vmatpush1.msra.mxu0 0.0
        %445 = vmatprep.subr.mxu0 0.0
        %446 = vmatpush1.msra.mxu0 0.0
        %447 = vmatprep.subr.mxu0 0.0
        %448 = vmatpush1.msra.mxu0 0.0
        %449 = vmatprep.subr.mxu0 0.0
        %450 = vmatpush1.msra.mxu0 0.0
        %451 = vmatprep.subr.mxu0 0.0
        %452 = vmatpush1.msra.mxu0 0.0
        %453 = vmatprep.subr.mxu0 0.0
        %454 = vmatpush1.msra.mxu0 0.0
        %455 = vmatprep.subr.mxu0 0.0
        %456 = vmatpush1.msra.mxu0 0.0
        %457 = vmatprep.mubr.f32.mxu0 0.0
        %458 = vmatmul.mubr.f32.gmra.mrb[0].mxu0 %v391
        %v459 = vpop.f32.mrb[0].mxu0
        %v460 = vadd.f32 0.0, %v459
        %v461 = vpop.f32.mrb[0].mxu0
        %462 = vdwg.mxu0
        %v463 = vmul.f32 %v460, %v279
        %v464 = vsel %vm360, %v463, 0.0
        %465 = vadd.xlane.f32.xlu0 %v464
        %v466 = vpop.xlane.xlu0 %465
        %v467 = vsub.f32 0.0, %v466
        %v468 = vmin.f32 %v467, 0.0
        %v469 = vand.u32 2147483647, %v467
        %v470 = vsub.f32 0.0, %v469
        %v471 = vmul.f32 %v470, 1.442695
        %v472 = vpow.pop %v471
        %v473 = vadd.f32 %v472, 1.0
        %v474 = vlog2.pop %v473
        %v475 = vmul.f32 %v474, 0.6931472
        %v476 = vsub.f32 %v468, %v475
        %v477 = vsel %vm373, %v476, 0.0
        %478 = vadd.xlane.f32.xlu0 %v477
        %v479 = vpop.xlane.xlu0 %478
        %v480 = vrot.slane %v479, 4
        %v481 = vadd.f32 %v479, %v480
        %v482 = vrot.slane %v481, 2
        %v483 = vadd.f32 %v481, %v482
        %v484 = vrot.slane %v483, 1
        %v485 = vadd.f32 %v483, %v484
        %s486 = vtos %v485
        %s487 = sadd.f32 %s486, 0.0
        %488 = vset.pattern.permute.xlu0 6
        %489 = vperm.xlu0 %488, %v166
        %v490 = vpop.permute.xlu0 %489
        %vm491 = vcmp.eq.s32.totalorder %v176, %v490
        %v492 = vsel %vm491, 1, 0
        %v493 = vcvt.s32.f32 %v492
        %v495 = vsel %vm205, %v493, 0
        %497 = vmatprep.subr.mxu0 0.0
        %498 = vmatpush1.msra.mxu0 %v171
        %499 = vmatprep.subr.mxu0 0.0
        %500 = vmatpush1.msra.mxu0 %v172
        %501 = vmatprep.subr.mxu0 0.0
        %502 = vmatpush1.msra.mxu0 %v173
        %503 = vmatprep.subr.mxu0 0.0
        %504 = vmatpush1.msra.mxu0 %v174
        %505 = vmatprep.subr.mxu0 0.0
        %506 = vmatpush1.msra.mxu0 0.0
        %507 = vmatprep.subr.mxu0 0.0
        %508 = vmatpush1.msra.mxu0 0.0
        %509 = vmatprep.subr.mxu0 0.0
        %510 = vmatpush1.msra.mxu0 0.0
        %511 = vmatprep.subr.mxu0 0.0
        %512 = vmatpush1.msra.mxu0 0.0
        %513 = vmatprep.subr.mxu0 0.0
        %514 = vmatpush1.msra.mxu0 0.0
        %515 = vmatprep.subr.mxu0 0.0
        %516 = vmatpush1.msra.mxu0 0.0
        %517 = vmatprep.subr.mxu0 0.0
        %518 = vmatpush1.msra.mxu0 0.0
        %519 = vmatprep.subr.mxu0 0.0
        %520 = vmatpush1.msra.mxu0 0.0
        %521 = vmatprep.subr.mxu0 0.0
        %522 = vmatpush1.msra.mxu0 0.0
        %523 = vmatprep.subr.mxu0 0.0
        %524 = vmatpush1.msra.mxu0 0.0
        %525 = vmatprep.subr.mxu0 0.0
        %526 = vmatpush1.msra.mxu0 0.0
        %527 = vmatprep.subr.mxu0 0.0
        %528 = vmatpush1.msra.mxu0 0.0
        %529 = vmatprep.subr.mxu0 0.0
        %530 = vmatpush1.msra.mxu0 0.0
        %531 = vmatprep.subr.mxu0 0.0
        %532 = vmatpush1.msra.mxu0 0.0
        %533 = vmatprep.subr.mxu0 0.0
        %534 = vmatpush1.msra.mxu0 0.0
        %535 = vmatprep.subr.mxu0 0.0
        %536 = vmatpush1.msra.mxu0 0.0
        %537 = vmatprep.subr.mxu0 0.0
        %538 = vmatpush1.msra.mxu0 0.0
        %539 = vmatprep.subr.mxu0 0.0
        %540 = vmatpush1.msra.mxu0 0.0
        %541 = vmatprep.subr.mxu0 0.0
        %542 = vmatpush1.msra.mxu0 0.0
        %543 = vmatprep.subr.mxu0 0.0
        %544 = vmatpush1.msra.mxu0 0.0
        %545 = vmatprep.subr.mxu0 0.0
        %546 = vmatpush1.msra.mxu0 0.0
        %547 = vmatprep.subr.mxu0 0.0
        %548 = vmatpush1.msra.mxu0 0.0
        %549 = vmatprep.subr.mxu0 0.0
        %550 = vmatpush1.msra.mxu0 0.0
        %551 = vmatprep.subr.mxu0 0.0
        %552 = vmatpush1.msra.mxu0 0.0
        %553 = vmatprep.subr.mxu0 0.0
        %554 = vmatpush1.msra.mxu0 0.0
        %555 = vmatprep.subr.mxu0 0.0
        %556 = vmatpush1.msra.mxu0 0.0
        %557 = vmatprep.subr.mxu0 0.0
        %558 = vmatpush1.msra.mxu0 0.0
        %559 = vmatprep.subr.mxu0 0.0
        %560 = vmatpush1.msra.mxu0 0.0
        %561 = vmatprep.mubr.f32.mxu0 0.0
        %562 = vmatmul.mubr.f32.gmra.mrb[0].mxu0 %v495
        %v563 = vpop.f32.mrb[0].mxu0
        %v564 = vadd.f32 0.0, %v563
        %v565 = vpop.f32.mrb[0].mxu0
        %566 = vdwg.mxu0
        %v567 = vmul.f32 %v564, %v279
        %v568 = vsel %vm360, %v567, 0.0
        %569 = vadd.xlane.f32.xlu0 %v568
        %v570 = vpop.xlane.xlu0 %569
        %v571 = vsub.f32 0.0, %v570
        %v572 = vmin.f32 %v571, 0.0
        %v573 = vand.u32 2147483647, %v571
        %v574 = vsub.f32 0.0, %v573
        %v575 = vmul.f32 %v574, 1.442695
        %v576 = vpow.pop %v575
        %v577 = vadd.f32 %v576, 1.0
        %v578 = vlog2.pop %v577
        %v579 = vmul.f32 %v578, 0.6931472
        %v580 = vsub.f32 %v572, %v579
        %v581 = vsel %vm373, %v580, 0.0
        %582 = vadd.xlane.f32.xlu0 %v581
        %v583 = vpop.xlane.xlu0 %582
        %v584 = vrot.slane %v583, 4
        %v585 = vadd.f32 %v583, %v584
        %v586 = vrot.slane %v585, 2
        %v587 = vadd.f32 %v585, %v586
        %v588 = vrot.slane %v587, 1
        %v589 = vadd.f32 %v587, %v588
        %s590 = vtos %v589
        %s591 = sadd.f32 %s487, %s590
        %592 = vset.pattern.permute.xlu0 7
        %593 = vperm.xlu0 %592, %v166
        %v594 = vpop.permute.xlu0 %593
        %vm595 = vcmp.eq.s32.totalorder %v176, %v594
        %v596 = vsel %vm595, 1, 0
        %v597 = vcvt.s32.f32 %v596
        %v599 = vsel %vm205, %v597, 0
        %601 = vmatprep.subr.mxu0 0.0
        %602 = vmatpush1.msra.mxu0 %v171
        %603 = vmatprep.subr.mxu0 0.0
        %604 = vmatpush1.msra.mxu0 %v172
        %605 = vmatprep.subr.mxu0 0.0
        %606 = vmatpush1.msra.mxu0 %v173
        %607 = vmatprep.subr.mxu0 0.0
        %608 = vmatpush1.msra.mxu0 %v174
        %609 = vmatprep.subr.mxu0 0.0
        %610 = vmatpush1.msra.mxu0 0.0
        %611 = vmatprep.subr.mxu0 0.0
        %612 = vmatpush1.msra.mxu0 0.0
        %613 = vmatprep.subr.mxu0 0.0
        %614 = vmatpush1.msra.mxu0 0.0
        %615 = vmatprep.subr.mxu0 0.0
        %616 = vmatpush1.msra.mxu0 0.0
        %617 = vmatprep.subr.mxu0 0.0
        %618 = vmatpush1.msra.mxu0 0.0
        %619 = vmatprep.subr.mxu0 0.0
        %620 = vmatpush1.msra.mxu0 0.0
        %621 = vmatprep.subr.mxu0 0.0
        %622 = vmatpush1.msra.mxu0 0.0
        %623 = vmatprep.subr.mxu0 0.0
        %624 = vmatpush1.msra.mxu0 0.0
        %625 = vmatprep.subr.mxu0 0.0
        %626 = vmatpush1.msra.mxu0 0.0
        %627 = vmatprep.subr.mxu0 0.0
        %628 = vmatpush1.msra.mxu0 0.0
        %629 = vmatprep.subr.mxu0 0.0
        %630 = vmatpush1.msra.mxu0 0.0
        %631 = vmatprep.subr.mxu0 0.0
        %632 = vmatpush1.msra.mxu0 0.0
        %633 = vmatprep.subr.mxu0 0.0
        %634 = vmatpush1.msra.mxu0 0.0
        %635 = vmatprep.subr.mxu0 0.0
        %636 = vmatpush1.msra.mxu0 0.0
        %637 = vmatprep.subr.mxu0 0.0
        %638 = vmatpush1.msra.mxu0 0.0
        %639 = vmatprep.subr.mxu0 0.0
        %640 = vmatpush1.msra.mxu0 0.0
        %641 = vmatprep.subr.mxu0 0.0
        %642 = vmatpush1.msra.mxu0 0.0
        %643 = vmatprep.subr.mxu0 0.0
        %644 = vmatpush1.msra.mxu0 0.0
        %645 = vmatprep.subr.mxu0 0.0
        %646 = vmatpush1.msra.mxu0 0.0
        %647 = vmatprep.subr.mxu0 0.0
        %648 = vmatpush1.msra.mxu0 0.0
        %649 = vmatprep.subr.mxu0 0.0
        %650 = vmatpush1.msra.mxu0 0.0
        %651 = vmatprep.subr.mxu0 0.0
        %652 = vmatpush1.msra.mxu0 0.0
        %653 = vmatprep.subr.mxu0 0.0
        %654 = vmatpush1.msra.mxu0 0.0
        %655 = vmatprep.subr.mxu0 0.0
        %656 = vmatpush1.msra.mxu0 0.0
        %657 = vmatprep.subr.mxu0 0.0
        %658 = vmatpush1.msra.mxu0 0.0
        %659 = vmatprep.subr.mxu0 0.0
        %660 = vmatpush1.msra.mxu0 0.0
        %661 = vmatprep.subr.mxu0 0.0
        %662 = vmatpush1.msra.mxu0 0.0
        %663 = vmatprep.subr.mxu0 0.0
        %664 = vmatpush1.msra.mxu0 0.0
        %665 = vmatprep.mubr.f32.mxu0 0.0
        %666 = vmatmul.mubr.f32.gmra.mrb[0].mxu0 %v599
        %v667 = vpop.f32.mrb[0].mxu0
        %v668 = vadd.f32 0.0, %v667
        %v669 = vpop.f32.mrb[0].mxu0
        %670 = vdwg.mxu0
        %v671 = vmul.f32 %v668, %v279
        %v672 = vsel %vm360, %v671, 0.0
        %673 = vadd.xlane.f32.xlu0 %v672
        %v674 = vpop.xlane.xlu0 %673
        %v675 = vsub.f32 0.0, %v674
        %v676 = vmin.f32 %v675, 0.0
        %v677 = vand.u32 2147483647, %v675
        %v678 = vsub.f32 0.0, %v677
        %v679 = vmul.f32 %v678, 1.442695
        %v680 = vpow.pop %v679
        %v681 = vadd.f32 %v680, 1.0
        %v682 = vlog2.pop %v681
        %v683 = vmul.f32 %v682, 0.6931472
        %v684 = vsub.f32 %v676, %v683
        %v685 = vsel %vm373, %v684, 0.0
        %686 = vadd.xlane.f32.xlu0 %v685
        %v687 = vpop.xlane.xlu0 %686
        %v688 = vrot.slane %v687, 4
        %v689 = vadd.f32 %v687, %v688
        %v690 = vrot.slane %v689, 2
        %v691 = vadd.f32 %v689, %v690
        %v692 = vrot.slane %v691, 1
        %v693 = vadd.f32 %v691, %v692
        %s694 = vtos %v693
        %s695 = sadd.f32 %s591, %s694
        %696 = vset.pattern.permute.xlu0 8
        %697 = vperm.xlu0 %696, %v166
        %v698 = vpop.permute.xlu0 %697
        %vm699 = vcmp.eq.s32.totalorder %v176, %v698
        %v700 = vsel %vm699, 1, 0
        %v701 = vcvt.s32.f32 %v700
        %v703 = vsel %vm205, %v701, 0
        %705 = vmatprep.subr.mxu0 0.0
        %706 = vmatpush1.msra.mxu0 %v171
        %707 = vmatprep.subr.mxu0 0.0
        %708 = vmatpush1.msra.mxu0 %v172
        %709 = vmatprep.subr.mxu0 0.0
        %710 = vmatpush1.msra.mxu0 %v173
        %711 = vmatprep.subr.mxu0 0.0
        %712 = vmatpush1.msra.mxu0 %v174
        %713 = vmatprep.subr.mxu0 0.0
        %714 = vmatpush1.msra.mxu0 0.0
        %715 = vmatprep.subr.mxu0 0.0
        %716 = vmatpush1.msra.mxu0 0.0
        %717 = vmatprep.subr.mxu0 0.0
        %718 = vmatpush1.msra.mxu0 0.0
        %719 = vmatprep.subr.mxu0 0.0
        %720 = vmatpush1.msra.mxu0 0.0
        %721 = vmatprep.subr.mxu0 0.0
        %722 = vmatpush1.msra.mxu0 0.0
        %723 = vmatprep.subr.mxu0 0.0
        %724 = vmatpush1.msra.mxu0 0.0
        %725 = vmatprep.subr.mxu0 0.0
        %726 = vmatpush1.msra.mxu0 0.0
        %727 = vmatprep.subr.mxu0 0.0
        %728 = vmatpush1.msra.mxu0 0.0
        %729 = vmatprep.subr.mxu0 0.0
        %730 = vmatpush1.msra.mxu0 0.0
        %731 = vmatprep.subr.mxu0 0.0
        %732 = vmatpush1.msra.mxu0 0.0
        %733 = vmatprep.subr.mxu0 0.0
        %734 = vmatpush1.msra.mxu0 0.0
        %735 = vmatprep.subr.mxu0 0.0
        %736 = vmatpush1.msra.mxu0 0.0
        %737 = vmatprep.subr.mxu0 0.0
        %738 = vmatpush1.msra.mxu0 0.0
        %739 = vmatprep.subr.mxu0 0.0
        %740 = vmatpush1.msra.mxu0 0.0
        %741 = vmatprep.subr.mxu0 0.0
        %742 = vmatpush1.msra.mxu0 0.0
        %743 = vmatprep.subr.mxu0 0.0
        %744 = vmatpush1.msra.mxu0 0.0
        %745 = vmatprep.subr.mxu0 0.0
        %746 = vmatpush1.msra.mxu0 0.0
        %747 = vmatprep.subr.mxu0 0.0
        %748 = vmatpush1.msra.mxu0 0.0
        %749 = vmatprep.subr.mxu0 0.0
        %750 = vmatpush1.msra.mxu0 0.0
        %751 = vmatprep.subr.mxu0 0.0
        %752 = vmatpush1.msra.mxu0 0.0
        %753 = vmatprep.subr.mxu0 0.0
        %754 = vmatpush1.msra.mxu0 0.0
        %755 = vmatprep.subr.mxu0 0.0
        %756 = vmatpush1.msra.mxu0 0.0
        %757 = vmatprep.subr.mxu0 0.0
        %758 = vmatpush1.msra.mxu0 0.0
        %759 = vmatprep.subr.mxu0 0.0
        %760 = vmatpush1.msra.mxu0 0.0
        %761 = vmatprep.subr.mxu0 0.0
        %762 = vmatpush1.msra.mxu0 0.0
        %763 = vmatprep.subr.mxu0 0.0
        %764 = vmatpush1.msra.mxu0 0.0
        %765 = vmatprep.subr.mxu0 0.0
        %766 = vmatpush1.msra.mxu0 0.0
        %767 = vmatprep.subr.mxu0 0.0
        %768 = vmatpush1.msra.mxu0 0.0
        %769 = vmatprep.mubr.f32.mxu0 0.0
        %770 = vmatmul.mubr.f32.gmra.mrb[0].mxu0 %v703
        %v771 = vpop.f32.mrb[0].mxu0
        %v772 = vadd.f32 0.0, %v771
        %v773 = vpop.f32.mrb[0].mxu0
        %774 = vdwg.mxu0
        %v775 = vmul.f32 %v772, %v279
        %v776 = vsel %vm360, %v775, 0.0
        %777 = vadd.xlane.f32.xlu0 %v776
        %v778 = vpop.xlane.xlu0 %777
        %v779 = vsub.f32 0.0, %v778
        %v780 = vmin.f32 %v779, 0.0
        %v781 = vand.u32 2147483647, %v779
        %v782 = vsub.f32 0.0, %v781
        %v783 = vmul.f32 %v782, 1.442695
        %v784 = vpow.pop %v783
        %v785 = vadd.f32 %v784, 1.0
        %v786 = vlog2.pop %v785
        %v787 = vmul.f32 %v786, 0.6931472
        %v788 = vsub.f32 %v780, %v787
        %v789 = vsel %vm373, %v788, 0.0
        %790 = vadd.xlane.f32.xlu0 %v789
        %v791 = vpop.xlane.xlu0 %790
        %v792 = vrot.slane %v791, 4
        %v793 = vadd.f32 %v791, %v792
        %v794 = vrot.slane %v793, 2
        %v795 = vadd.f32 %v793, %v794
        %v796 = vrot.slane %v795, 1
        %v797 = vadd.f32 %v795, %v796
        %s798 = vtos %v797
        %s799 = sadd.f32 %s695, %s798
        %800 = vset.pattern.permute.xlu0 9
        %801 = vperm.xlu0 %800, %v166
        %v802 = vpop.permute.xlu0 %801
        %vm803 = vcmp.eq.s32.totalorder %v176, %v802
        %v804 = vsel %vm803, 1, 0
        %v805 = vcvt.s32.f32 %v804
        %v807 = vsel %vm205, %v805, 0
        %809 = vmatprep.subr.mxu0 0.0
        %810 = vmatpush1.msra.mxu0 %v171
        %811 = vmatprep.subr.mxu0 0.0
        %812 = vmatpush1.msra.mxu0 %v172
        %813 = vmatprep.subr.mxu0 0.0
        %814 = vmatpush1.msra.mxu0 %v173
        %815 = vmatprep.subr.mxu0 0.0
        %816 = vmatpush1.msra.mxu0 %v174
        %817 = vmatprep.subr.mxu0 0.0
        %818 = vmatpush1.msra.mxu0 0.0
        %819 = vmatprep.subr.mxu0 0.0
        %820 = vmatpush1.msra.mxu0 0.0
        %821 = vmatprep.subr.mxu0 0.0
        %822 = vmatpush1.msra.mxu0 0.0
        %823 = vmatprep.subr.mxu0 0.0
        %824 = vmatpush1.msra.mxu0 0.0
        %825 = vmatprep.subr.mxu0 0.0
        %826 = vmatpush1.msra.mxu0 0.0
        %827 = vmatprep.subr.mxu0 0.0
        %828 = vmatpush1.msra.mxu0 0.0
        %829 = vmatprep.subr.mxu0 0.0
        %830 = vmatpush1.msra.mxu0 0.0
        %831 = vmatprep.subr.mxu0 0.0
        %832 = vmatpush1.msra.mxu0 0.0
        %833 = vmatprep.subr.mxu0 0.0
        %834 = vmatpush1.msra.mxu0 0.0
        %835 = vmatprep.subr.mxu0 0.0
        %836 = vmatpush1.msra.mxu0 0.0
        %837 = vmatprep.subr.mxu0 0.0
        %838 = vmatpush1.msra.mxu0 0.0
        %839 = vmatprep.subr.mxu0 0.0
        %840 = vmatpush1.msra.mxu0 0.0
        %841 = vmatprep.subr.mxu0 0.0
        %842 = vmatpush1.msra.mxu0 0.0
        %843 = vmatprep.subr.mxu0 0.0
        %844 = vmatpush1.msra.mxu0 0.0
        %845 = vmatprep.subr.mxu0 0.0
        %846 = vmatpush1.msra.mxu0 0.0
        %847 = vmatprep.subr.mxu0 0.0
        %848 = vmatpush1.msra.mxu0 0.0
        %849 = vmatprep.subr.mxu0 0.0
        %850 = vmatpush1.msra.mxu0 0.0
        %851 = vmatprep.subr.mxu0 0.0
        %852 = vmatpush1.msra.mxu0 0.0
        %853 = vmatprep.subr.mxu0 0.0
        %854 = vmatpush1.msra.mxu0 0.0
        %855 = vmatprep.subr.mxu0 0.0
        %856 = vmatpush1.msra.mxu0 0.0
        %857 = vmatprep.subr.mxu0 0.0
        %858 = vmatpush1.msra.mxu0 0.0
        %859 = vmatprep.subr.mxu0 0.0
        %860 = vmatpush1.msra.mxu0 0.0
        %861 = vmatprep.subr.mxu0 0.0
        %862 = vmatpush1.msra.mxu0 0.0
        %863 = vmatprep.subr.mxu0 0.0
        %864 = vmatpush1.msra.mxu0 0.0
        %865 = vmatprep.subr.mxu0 0.0
        %866 = vmatpush1.msra.mxu0 0.0
        %867 = vmatprep.subr.mxu0 0.0
        %868 = vmatpush1.msra.mxu0 0.0
        %869 = vmatprep.subr.mxu0 0.0
        %870 = vmatpush1.msra.mxu0 0.0
        %871 = vmatprep.subr.mxu0 0.0
        %872 = vmatpush1.msra.mxu0 0.0
        %873 = vmatprep.mubr.f32.mxu0 0.0
        %874 = vmatmul.mubr.f32.gmra.mrb[0].mxu0 %v807
        %v875 = vpop.f32.mrb[0].mxu0
        %v876 = vadd.f32 0.0, %v875
        %v877 = vpop.f32.mrb[0].mxu0
        %878 = vdwg.mxu0
        %v879 = vmul.f32 %v876, %v279
        %v880 = vsel %vm360, %v879, 0.0
        %881 = vadd.xlane.f32.xlu0 %v880
        %v882 = vpop.xlane.xlu0 %881
        %v883 = vsub.f32 0.0, %v882
        %v884 = vmin.f32 %v883, 0.0
        %v885 = vand.u32 2147483647, %v883
        %v886 = vsub.f32 0.0, %v885
        %v887 = vmul.f32 %v886, 1.442695
        %v888 = vpow.pop %v887
        %v889 = vadd.f32 %v888, 1.0
        %v890 = vlog2.pop %v889
        %v891 = vmul.f32 %v890, 0.6931472
        %v892 = vsub.f32 %v884, %v891
        %v893 = vsel %vm373, %v892, 0.0
        %894 = vadd.xlane.f32.xlu0 %v893
        %v895 = vpop.xlane.xlu0 %894
        %v896 = vrot.slane %v895, 4
        %v897 = vadd.f32 %v895, %v896
        %v898 = vrot.slane %v897, 2
        %v899 = vadd.f32 %v897, %v898
        %v900 = vrot.slane %v899, 1
        %v901 = vadd.f32 %v899, %v900
        %s902 = vtos %v901
        %s903 = sadd.f32 %s799, %s902
        %v904 = vlaneseq
        %v905 = vshrl.u32 %v904, 7
        %vm906 = vcmp.eq.s32.totalorder %v905, 0
        %vm907 = vcmp.eq.s32.totalorder %v176, 0
        %vm908 = vmand %vm906, %vm907
        %vm909 = vcmp.eq.s32.totalorder %v176, 1
        %vm910 = vmand %vm906, %vm909
        %v911 = vstv %s903
        %v912 = vsel %vm910, %v911, 0.0
        %v913 = vstv %s383
        %v914 = vsel %vm908, %v913, %v912
        %915 = vst [vmem:[%s161] sm:$0xff] %v914
        %s916 = sand.u32 %s93, 1
        %s917 = scalar_lea.sflag [#allocation3], %s916
        %s918 = sand.u32 %s93, 1
        %s919 = smul.addr %s918, 8
        %s920 = scalar_lea.vmem [#allocation2], %s919
        // Predicated region
        $region33: #{tpu_custom_call.1} parent=31 // pred_check
          %p921 = pneg %p103
        $region34: #{tpu_custom_call.1} parent=31 // pred_check_branch
          %923 = sbr.rel (%p921) target = $region36
        $region35: #{tpu_custom_call.1} parent=31 // pred_region
          %s925 = ssub.s32 128, 128
          %926 = vsyncadd %s917, %s925
          %s927 = smul.addr %s17, 128
          %s928 = scalar_lea.hbm %s3, %s927
          %s930 = sshll.u32 %s920, 4
          %s931 = int_to_ptr.vmem [resolvable:$true] %s930
          %933 = dma.vmem_to_hbm [thread:$0]  %s931, 128, %s928, %s917
        $region36: #{tpu_custom_call.1} parent=31 // pred_fallthru
          _
      $region32: #{tpu_custom_call.1} parent=5 // pred_fallthru
        _
      %p934 = scmp.le.s32.totalorder 2, %s12
      // Predicated region
      $region37: #{tpu_custom_call.1} parent=5 // pred_check
        %p935 = pneg %p934
      $region38: #{tpu_custom_call.1} parent=5 // pred_check_branch
        %937 = sbr.rel (%p935) target = $region40
      $region39: #{tpu_custom_call.1} parent=5 // pred_region
        %s938 = ssub.s32 %s12, 2
        // Predicated region
        $region41: #{tpu_custom_call.1} parent=39 // pred_check
          %p939 = pneg %p109
        $region42: #{tpu_custom_call.1} parent=39 // pred_check_branch
          %941 = sbr.rel (%p939) target = $region44
        $region43: #{tpu_custom_call.1} parent=39 // pred_region
          %s942 = sand.u32 %s94, 1
          %s943 = scalar_lea.sflag [#allocation3], %s942
          %s944 = sand.u32 %s94, 1
          %s945 = smul.addr %s944, 8
          %s946 = scalar_lea.vmem [#allocation2], %s945
          %947 = dma.done %s943, 128
        $region44: #{tpu_custom_call.1} parent=39 // pred_fallthru
          _
      $region40: #{tpu_custom_call.1} parent=5 // pred_fallthru
        _
    $region6: #{tpu_custom_call.1} parent=1 // loop_footer
      %s16 = sadd.s32 1, %s12
    $region7: #{tpu_custom_call.1} parent=1 // loop_footer_branch
      %11 = sbr.rel target = $region3
    $region8: #{tpu_custom_call.1} parent=1 // loop_exit
      _
    %948 = vsyncpa [#allocation3], 1
    %s949 = scalar_lea.sflag [#allocation3], 1
    %950 = vsyncpa %s949, 1

</llo_original>
